<compile_context>
chip_gen: v7x
topology: tpu7x:2x2x1
jax: 0.10.0
libtpu: 0.0.40
codegen_flags: <defaults>
</compile_context>

<pallas_src>
import math

import jax
import jax.numpy as jnp
from jax.experimental import pallas as pl
from jax.experimental.pallas import tpu as pltpu


# ----------------------------------------------------------------------------
# Pallas kernel (backward only — the forward identity needs no kernel)
# ----------------------------------------------------------------------------

def _neg_scale_kernel(c_ref, g_ref, o_ref):
    # dL/dx = (-coeff) * dL/dy.  c_ref is a (1,) f32 SMEM scalar holding -coeff;
    # cast it once to the gradient dtype so the multiply runs in native precision.
    o_ref[...] = g_ref[...] * c_ref[0].astype(o_ref.dtype)


# ----------------------------------------------------------------------------
# Tiling plan + pallas_call wrapper
# ----------------------------------------------------------------------------

_LANE_WIDTHS = (2048, 1024, 512, 256, 128)    # lane-dense widths (multiples of 128)
_BLOCK_BYTES = 4 * 1024 * 1024                # per-block budget: 2 ops x 2 bufs = 16 MiB VMEM


def _plan(total, itemsize):
    """Pick a lane-dense 2-D view (rows, width), tail padding, and a row tile bm."""
    width = next((w for w in _LANE_WIDTHS if total % w == 0), None)
    if width is None:
        width = 128                       # awkward sizes: pad the flat tail to one lane row
    pad = (-total) % width
    rows = (total + pad) // width

    row_bytes = width * itemsize
    bm = min(rows, max(1, _BLOCK_BYTES // row_bytes))
    # Guarantee >= 2 grid steps for tensors over ~1 MiB (v7x megacore + DMA/compute overlap).
    if rows * row_bytes > (1 << 20) and bm >= rows:
        bm = max(1, rows // 2)
    if bm < rows:
        bm = max(8, (bm // 8) * 8)        # sublane-aligned tile; cdiv grid masks the ragged tail
        bm = min(bm, rows)
    return width, pad, rows, bm


def _neg_scale(g, coeff):
    """One memory-bound Pallas pass computing (-coeff) * g."""
    shape = g.shape
    dtype = g.dtype
    total = math.prod(shape) if shape else 1
    width, pad, rows, bm = _plan(total, jnp.dtype(dtype).itemsize)

    flat = g.reshape(-1)
    if pad:
        flat = jnp.pad(flat, (0, pad))    # only for non-128-divisible element counts
    g2 = flat.reshape(rows, width)
    neg_c = (-jnp.asarray(coeff, jnp.float32)).reshape(1)   # negate on host; (1,) f32 -> SMEM

    out = pl.pallas_call(
        _neg_scale_kernel,
        out_shape=jax.ShapeDtypeStruct((rows, width), dtype),
        grid=(pl.cdiv(rows, bm),),
        in_specs=[
            pl.BlockSpec(memory_space=pltpu.MemorySpace.SMEM),   # -coeff scalar
            pl.BlockSpec((bm, width), lambda i: (i, 0)),
        ],
        out_specs=pl.BlockSpec((bm, width), lambda i: (i, 0)),
        input_output_aliases={1: 0},      # donate the cotangent buffer as the output
        compiler_params=pltpu.CompilerParams(
            dimension_semantics=("parallel",),
            vmem_limit_bytes=32 << 20,
        ),
    )(neg_c, g2)

    out = out.reshape(-1)
    if pad:
        out = out[:total]
    return out.reshape(shape)


# ----------------------------------------------------------------------------
# GradientReverseFunction as a custom_vjp
# ----------------------------------------------------------------------------

@jax.custom_vjp
def grad_reverse(x, coeff):
    del coeff                 # only affects the backward pass
    return x                  # R(x) = x: identity needs no kernel (zero HBM traffic)


def _grad_reverse_fwd(x, coeff):
    return x, coeff


def _grad_reverse_bwd(coeff, g):
    # PyTorch returns (grad_output.neg() * coeff, None); coeff gets a zero cotangent here.
    return _neg_scale(g, coeff), jnp.zeros_like(coeff)


grad_reverse.defvjp(_grad_reverse_fwd, _grad_reverse_bwd)


class WarmStartGradientReverseLayer:
    """Gradient reverse layer with a warm-start coefficient schedule.

    iter_num / auto_step are host-side Python state, exactly like the nn.Module;
    the coeff schedule is scalar host math (no TPU op needed).
    """

    def __init__(self, alpha=1.0, lo=0.0, hi=1.0, max_iters=1000, auto_step=False):
        self.alpha = float(alpha)
        self.lo = float(lo)
        self.hi = float(hi)
        self.iter_num = 0
        self.max_iters = float(max_iters)
        self.auto_step = auto_step

    def coeff(self):
        return float(
            2.0 * (self.hi - self.lo)
            / (1.0 + math.exp(-self.alpha * self.iter_num / self.max_iters))
            - (self.hi - self.lo) + self.lo
        )

    def __call__(self, x):
        c = self.coeff()
        if self.auto_step:
            self.step()
        return grad_reverse(x, jnp.float32(c))

    def step(self):
        self.iter_num += 1


# ----------------------------------------------------------------------------
# Example run
# ----------------------------------------------------------------------------

if __name__ == "__main__":
    key = jax.random.PRNGKey(0)
    k1, k2 = jax.random.split(key)

    # Small shapes consistent with the module's typical use (feature maps -> domain head).
    x = jax.random.normal(k1, (2, 4, 16, 16), jnp.float32)     # lane-dense path (2048 elems)
    x_small = jax.random.normal(k2, (2, 5, 7), jnp.float32)    # awkward-shape (padded-tail) path

    layer = WarmStartGradientReverseLayer(alpha=1.0, lo=0.0, hi=1.0,
                                          max_iters=1000, auto_step=True)

    # Forward three times; iter_num advances and coeff follows the warm-start schedule.
    coeffs = []
    y = None
    for _ in range(3):
        coeffs.append(layer.coeff())
        y = layer(x)
    y = jax.block_until_ready(y)
    assert y.shape == x.shape, y.shape
    assert bool(jnp.allclose(y, x)), "GRL forward must be the identity"
    assert abs(coeffs[0] - 0.0) < 1e-6                  # schedule starts at (lo-centered) 0
    assert coeffs[2] > coeffs[1] > coeffs[0]            # and is monotonically increasing

    # Backward runs the Pallas kernel: d/dx sum(R(x)) == -coeff everywhere.
    coeff = jnp.float32(0.75)
    gx = jax.block_until_ready(jax.grad(lambda t: grad_reverse(t, coeff).sum())(x))
    assert bool(jnp.allclose(gx, -0.75 * jnp.ones_like(x), atol=1e-6))

    # Padded-tail path on the awkward shape (forward + backward).
    y2 = jax.block_until_ready(layer(x_small))
    assert bool(jnp.allclose(y2, x_small))
    g2 = jax.block_until_ready(jax.grad(lambda t: grad_reverse(t, coeff).sum())(x_small))
    assert bool(jnp.allclose(g2, -0.75 * jnp.ones_like(x_small), atol=1e-6))

    print("KERNEL_OK")
</pallas_src>

<mosaic_0001>
module attributes {stable_mosaic.version = 11 : i64} {
  func.func @_neg_scale_kernel(%arg0: i32, %arg1: memref<1xf32, #tpu.memory_space<smem>>, %arg2: memref<1x2048xf32, #tpu.memory_space<vmem>>, %arg3: memref<1x2048xf32, #tpu.memory_space<vmem>>) attributes {dimension_semantics = [#tpu.dimension_semantics<parallel>], iteration_bounds = array<i64: 1>, scalar_prefetch = 0 : i64, scratch_operands = 0 : i64, tpu.core_type = #tpu.core_type<tc>, window_params = [{transform_indices = @transform_0, window_bounds = array<i64: 1>}, {transform_indices = @transform_1, window_bounds = array<i64: 1, 2048>}, {transform_indices = @transform_2, window_bounds = array<i64: 1, 2048>}]} {
    %c0 = arith.constant 0 : index
    %c0_0 = arith.constant 0 : index
    %0 = vector.load %arg2[%c0, %c0_0] : memref<1x2048xf32, #tpu.memory_space<vmem>>, vector<1x2048xf32>
    %c0_1 = arith.constant 0 : index
    %1 = memref.load %arg1[%c0_1] : memref<1xf32, #tpu.memory_space<smem>>
    %2 = vector.broadcast %1 : f32 to vector<1x2048xf32>
    %3 = arith.mulf %0, %2 : vector<1x2048xf32>
    %c0_2 = arith.constant 0 : index
    %c0_3 = arith.constant 0 : index
    %4 = vector.load %arg3[%c0_2, %c0_3] : memref<1x2048xf32, #tpu.memory_space<vmem>>, vector<1x2048xf32>
    tpu.vector_store %arg3[%c0_2, %c0_3], %3 {strides = array<i32>} : memref<1x2048xf32, #tpu.memory_space<vmem>>, vector<1x2048xf32>,
    return
  }
  func.func @transform_0(%arg0: i32) -> i32 {
    %c0_i32 = arith.constant 0 : i32
    %c0_i32_0 = arith.constant 0 : i32
    return %c0_i32 : i32
  }
  func.func @transform_1(%arg0: i32) -> (i32, i32) {
    %c0_i32 = arith.constant 0 : i32
    %c0_i32_0 = arith.constant 0 : i32
    return %arg0, %c0_i32 : i32, i32
  }
  func.func @transform_2(%arg0: i32) -> (i32, i32) {
    %c0_i32 = arith.constant 0 : i32
    %c0_i32_0 = arith.constant 0 : i32
    return %arg0, %c0_i32 : i32, i32
  }
}

</mosaic_0001>

<llo_original>
// kernel: tpu_custom_call.1
$region0: #{tpu_custom_call.1}
  #allocation0 [shape = 'u32[]', space=smem, size = 0x4, offset = 0x4, fixed_abs, tag = 'smem constant byte address 0x4 - core index']
  #allocation1 [shape = 'u32[144,128]{1,0:T(1,128)}', space=vmem, size = 0x12000, scoped, tag = 'internal scratch']
  #allocation2 [shape = 'f32[1]{0:T(128)S(6)}', space=smem, size = 0x200, scoped, tag = 'scoped memory for tpu_custom_call.1']
  %s0 = inlined_call_operand.<no memory space> [shape: f32[1], index: 0, kind: input, shape index: {}]
  %s1 = inlined_call_operand.hbm [shape: f32[1,2048], index: 1, kind: input, shape index: {}, may-alias: {1,2}]
  %s2 = inlined_call_operand.hbm [shape: f32[1,2048], index: 2, kind: output, shape index: {}, may-alias: {1,2}]
  %s3 = sld [smem:[#allocation0]]
  $region22: #{tpu_custom_call.1} parent=0
    _
  %s5 = ssub.s32 1, %s3
  %s6 = scalar_select 0, %s5, %s3
  %7 = sst [smem:[#allocation2]] %s0
  $region1: #{tpu_custom_call.1} parent=0
    #allocation3 [shape = 'u8[8192]{0}', space=vmem, size = 0x2000, scoped, tag = 'input window, operand 1, single buffered']
    #allocation4 [shape = 's32[1]{0}', space=sflag, size = 0x4, scoped, tag = 'scoped memory for tpu_custom_call.1']
    #allocation5 [shape = 's32[1]{0}', space=sflag, size = 0x4, scoped, tag = 'scoped memory for tpu_custom_call.1']
    #allocation6 [shape = 'u8[8192]{0}', space=vmem, size = 0x2000, scoped, tag = 'output window, operand 0, single buffered']
    %8 = vsyncpa [#allocation4], 0
    %9 = vsyncpa [#allocation5], 0
    // Predicated region
    $region2: #{tpu_custom_call.1} parent=1 // pred_check
      _
    $region3: #{tpu_custom_call.1} parent=1 // pred_check_branch
      %11 = sbr.rel (0) target = $region5
    $region4: #{tpu_custom_call.1} parent=1 // pred_region
      _
    $region5: #{tpu_custom_call.1} parent=1 // pred_fallthru
      _
    // Predicated region
    $region6: #{tpu_custom_call.1} parent=1 // pred_check
      _
    $region7: #{tpu_custom_call.1} parent=1 // pred_check_branch
      %13 = sbr.rel (0) target = $region9
    $region8: #{tpu_custom_call.1} parent=1 // pred_region
      %s15 = ssub.s32 256, 256
      %16 = vsyncadd [#allocation4], %s15
      %s18 = sshll.u32 [#allocation3], 4
      %s19 = int_to_ptr.vmem [resolvable:$true] %s18
      %21 = dma.hbm_to_vmem [thread:$0]  %s1, 256, %s19, [#allocation4]
    $region9: #{tpu_custom_call.1} parent=1 // pred_fallthru
      _
    // Predicated region
    $region10: #{tpu_custom_call.1} parent=1 // pred_check
      _
    $region11: #{tpu_custom_call.1} parent=1 // pred_check_branch
      %23 = sbr.rel (0) target = $region13
    $region12: #{tpu_custom_call.1} parent=1 // pred_region
      %24 = dma.done [#allocation4], 256
    $region13: #{tpu_custom_call.1} parent=1 // pred_fallthru
      _
    %v25 = vld [vmem:[#allocation3] sm:$0xff]
    %v26 = vld [vmem:[#allocation3 + $0x8] sm:$0xff]
    %s27 = sld [smem:[#allocation2]]
    %v28 = vstv %s27
    %v29 = vmul.f32 %v25, %v28
    %v30 = vmul.f32 %v26, %v28
    %31 = vst [vmem:[#allocation6] sm:$0xff] %v29
    %32 = vst [vmem:[#allocation6 + $0x8] sm:$0xff] %v30
    // Predicated region
    $region14: #{tpu_custom_call.1} parent=1 // pred_check
      _
    $region15: #{tpu_custom_call.1} parent=1 // pred_check_branch
      %34 = sbr.rel (0) target = $region17
    $region16: #{tpu_custom_call.1} parent=1 // pred_region
      %s36 = ssub.s32 256, 256
      %37 = vsyncadd [#allocation5], %s36
      %s39 = sshll.u32 [#allocation6], 4
      %s40 = int_to_ptr.vmem [resolvable:$true] %s39
      %42 = dma.vmem_to_hbm [thread:$0]  %s40, 256, %s2, [#allocation5]
    $region17: #{tpu_custom_call.1} parent=1 // pred_fallthru
      _
    // Predicated region
    $region18: #{tpu_custom_call.1} parent=1 // pred_check
      _
    $region19: #{tpu_custom_call.1} parent=1 // pred_check_branch
      %44 = sbr.rel (0) target = $region21
    $region20: #{tpu_custom_call.1} parent=1 // pred_region
      %45 = dma.done [#allocation5], 256
    $region21: #{tpu_custom_call.1} parent=1 // pred_fallthru
      _
    %46 = vsyncpa [#allocation4], 1
    %47 = vsyncpa [#allocation5], 1

</llo_original>
